<compile_context>
chip_gen: v5e
topology: v5e:2x2
jax: 0.10.0
libtpu: 0.0.40
codegen_flags: <defaults>
</compile_context>

<pallas_src>
import jax
import jax.numpy as jnp
from jax.experimental import pallas as pl
from jax.experimental.pallas import tpu as pltpu


def _fused_linear_tanh_gate_kernel(x_ref, wt_ref, b_ref, o_ref):
    # x_ref: (Mp, K) f32; wt_ref: (K, N) f32 (already transposed to MXU-natural
    # layout at parameter-prep time); b_ref: (1, N) f32; o_ref: (Mp, N) f32.
    x = x_ref[...]
    wt = wt_ref[...]
    b = b_ref[...]

    # Linear: x @ W^T + b, with W^T precomputed -> plain (M,K)@(K,N) MXU dot,
    # f32 accumulate.
    x1 = jnp.dot(x, wt, preferred_element_type=jnp.float32) + b

    # Elementwise tail, exactly the PyTorch forward, Horner-reduced:
    #   x3 = x1 + 0.044715*x1^3  ==  x1 * (1 + 0.044715*x1*x1)
    x2 = x1 * 0.5
    x3 = x1 * (1.0 + 0.044715 * (x1 * x1))
    x6 = jnp.tanh(x3) + 1.0
    o_ref[...] = (x2 * x6).astype(o_ref.dtype)


def fused_forward(x_flat, weight_t, bias2d):
    """x_flat: (Mp, K) f32 (Mp % 8 == 0); weight_t: (K, N); bias2d: (1, N)."""
    Mp, _ = x_flat.shape
    N = weight_t.shape[1]
    vmem = pltpu.MemorySpace.VMEM
    # No grid: single invocation, whole (small) arrays resident in VMEM.
    return pl.pallas_call(
        _fused_linear_tanh_gate_kernel,
        out_shape=jax.ShapeDtypeStruct((Mp, N), jnp.float32),
        in_specs=[
            pl.BlockSpec(memory_space=vmem),   # x   (Mp, K)
            pl.BlockSpec(memory_space=vmem),   # W^T (K, N)
            pl.BlockSpec(memory_space=vmem),   # b   (1, N)
        ],
        out_specs=pl.BlockSpec(memory_space=vmem),
    )(x_flat, weight_t, bias2d)


@jax.jit
def model_forward(x, weight_t, bias):
    """x: (..., 16) channels-last; weight_t: (in=16, out=16) pre-transposed; bias: (16,)."""
    lead = x.shape[:-1]
    K = x.shape[-1]
    N = weight_t.shape[1]

    x_flat = x.reshape(-1, K).astype(jnp.float32)
    M = x_flat.shape[0]

    # Pad rows to a multiple of 8 so every sublane group is full (no masked
    # tail loads/stores).  Zero rows are discarded by the slice below.
    Mp = ((M + 7) // 8) * 8
    if Mp != M:
        x_flat = jnp.pad(x_flat, ((0, Mp - M), (0, 0)))

    out = fused_forward(
        x_flat,
        weight_t.astype(jnp.float32),               # (K, N), transposed once at prep time
        bias.reshape(1, -1).astype(jnp.float32),    # (1, N)
    )
    return out[:M].reshape(*lead, N)


if __name__ == "__main__":
    key = jax.random.PRNGKey(0)
    k_x, k_w, k_b = jax.random.split(key, 3)

    # Small shapes consistent with the module: batch=2, spatial=5x5, feature=16
    # (channels-last so the Linear's feature axis is last).
    x = jax.random.normal(k_x, (2, 5, 5, 16), dtype=jnp.float32)

    # Deterministic parameter init (mimics nn.Linear's uniform(-1/sqrt(in), 1/sqrt(in))).
    in_features, out_features = 16, 16
    bound = 1.0 / jnp.sqrt(jnp.float32(in_features))
    weight = jax.random.uniform(k_w, (out_features, in_features),
                                minval=-bound, maxval=bound, dtype=jnp.float32)
    bias = jax.random.uniform(k_b, (out_features,),
                              minval=-bound, maxval=bound, dtype=jnp.float32)

    # Pre-transpose the weight ONCE outside the per-call path (parameter prep),
    # so the kernel consumes the MXU-natural (K, N) layout with no per-call op.
    weight_t = jnp.asarray(weight.T)   # (in, out)

    out = model_forward(x, weight_t, bias)
    jax.block_until_ready(out)

    # Reference check in plain JAX (matches the PyTorch forward exactly; note
    # this is the module's literal formula, not the standard tanh-GELU).
    x1 = x @ weight.T + bias
    ref = (x1 * 0.5) * (jnp.tanh(x1 + x1 * x1 * x1 * 0.044715) + 1.0)
    assert jnp.allclose(out, ref, atol=1e-5, rtol=1e-5), "mismatch vs reference"

    print("KERNEL_OK")
</pallas_src>

<mosaic_0001>
module attributes {stable_mosaic.version = 11 : i64} {
  func.func @_fused_linear_tanh_gate_kernel(%arg0: memref<56x16xf32, #tpu.memory_space<vmem>>, %arg1: memref<16x16xf32, #tpu.memory_space<vmem>>, %arg2: memref<1x16xf32, #tpu.memory_space<vmem>>, %arg3: memref<56x16xf32, #tpu.memory_space<vmem>>) attributes {dimension_semantics = [], scalar_prefetch = 0 : i64, scratch_operands = 0 : i64, tpu.core_type = #tpu.core_type<tc>} {
    %c0 = arith.constant 0 : index
    %c0_0 = arith.constant 0 : index
    %0 = vector.load %arg0[%c0, %c0_0] : memref<56x16xf32, #tpu.memory_space<vmem>>, vector<56x16xf32>
    %c0_1 = arith.constant 0 : index
    %c0_2 = arith.constant 0 : index
    %1 = vector.load %arg1[%c0_1, %c0_2] : memref<16x16xf32, #tpu.memory_space<vmem>>, vector<16x16xf32>
    %c0_3 = arith.constant 0 : index
    %c0_4 = arith.constant 0 : index
    %2 = vector.load %arg2[%c0_3, %c0_4] : memref<1x16xf32, #tpu.memory_space<vmem>>, vector<1x16xf32>
    %cst = arith.constant dense<0.000000e+00> : vector<56x16xf32>
    %3 = tpu.matmul %0, %1, %cst {dimension_numbers = #tpu.dot_dimension_numbers<[1], [0], [0], [1], [0, 0, 1, 1], [], []>} : vector<56x16xf32>, vector<16x16xf32>, vector<56x16xf32> -> vector<56x16xf32>
    %4 = vector.broadcast %2 : vector<1x16xf32> to vector<56x16xf32>
    %5 = arith.addf %3, %4 : vector<56x16xf32>
    %cst_5 = arith.constant 5.000000e-01 : f32
    %6 = vector.broadcast %cst_5 : f32 to vector<56x16xf32>
    %7 = arith.mulf %5, %6 : vector<56x16xf32>
    %8 = arith.mulf %5, %5 : vector<56x16xf32>
    %cst_6 = arith.constant 4.471500e-02 : f32
    %9 = vector.broadcast %cst_6 : f32 to vector<56x16xf32>
    %10 = arith.mulf %9, %8 : vector<56x16xf32>
    %cst_7 = arith.constant 1.000000e+00 : f32
    %11 = vector.broadcast %cst_7 : f32 to vector<56x16xf32>
    %12 = arith.addf %11, %10 : vector<56x16xf32>
    %13 = arith.mulf %5, %12 : vector<56x16xf32>
    %14 = math.tanh %13 : vector<56x16xf32>
    %cst_8 = arith.constant 1.000000e+00 : f32
    %15 = vector.broadcast %cst_8 : f32 to vector<56x16xf32>
    %16 = arith.addf %14, %15 : vector<56x16xf32>
    %17 = arith.mulf %7, %16 : vector<56x16xf32>
    %c0_9 = arith.constant 0 : index
    %c0_10 = arith.constant 0 : index
    %18 = vector.load %arg3[%c0_9, %c0_10] : memref<56x16xf32, #tpu.memory_space<vmem>>, vector<56x16xf32>
    tpu.vector_store %arg3[%c0_9, %c0_10], %17 {strides = array<i32>} : memref<56x16xf32, #tpu.memory_space<vmem>>, vector<56x16xf32>,
    return
  }
}

</mosaic_0001>

<llo_original>
// kernel: model_forward.1
$region0: #{model_forward.1}
  #allocation0 [shape = 'u32[]', space=smem, size = 0x4, offset = 0x4, fixed_abs, tag = 'smem constant byte address 0x4 - core index']
  #allocation1 [shape = 'u32[72,128]{1,0:T(1,128)}', space=vmem, size = 0x9000, scoped, tag = 'internal scratch']
  %s0 = inlined_call_operand.vmem [shape: f32[56,16], index: 0, kind: input, shape index: {}]
  %s1 = inlined_call_operand.vmem [shape: f32[16,16], index: 1, kind: input, shape index: {}]
  %s2 = inlined_call_operand.vmem [shape: f32[1,16], index: 2, kind: input, shape index: {}]
  %s3 = inlined_call_operand.vmem [shape: f32[56,16], index: 3, kind: output, shape index: {}]
  %s4 = sld [smem:[#allocation0]]
  $region22: #{model_forward.1} parent=0
    _
  %s6 = ssub.s32 1, %s4
  %s7 = scalar_select 0, %s6, %s4
  // Predicated region
  $region2: #{model_forward.1} parent=0 // pred_check
    _
  $region3: #{model_forward.1} parent=0 // pred_check_branch
    %9 = sbr.rel (0) target = $region5
  $region4: #{model_forward.1} parent=0 // pred_region
    _
  $region5: #{model_forward.1} parent=0 // pred_fallthru
    _
  // Predicated region
  $region6: #{model_forward.1} parent=0 // pred_check
    _
  $region7: #{model_forward.1} parent=0 // pred_check_branch
    %11 = sbr.rel (0) target = $region9
  $region8: #{model_forward.1} parent=0 // pred_region
    _
  $region9: #{model_forward.1} parent=0 // pred_fallthru
    _
  // Predicated region
  $region10: #{model_forward.1} parent=0 // pred_check
    _
  $region11: #{model_forward.1} parent=0 // pred_check_branch
    %13 = sbr.rel (0) target = $region13
  $region12: #{model_forward.1} parent=0 // pred_region
    _
  $region13: #{model_forward.1} parent=0 // pred_fallthru
    _
  %v14 = vld [vmem:[%s0] sm:$0xff]
  %v15 = vld [vmem:[%s0 + $0x8] sm:$0xff]
  %v16 = vld [vmem:[%s0 + $0x10] sm:$0xff]
  %v17 = vld [vmem:[%s0 + $0x18] sm:$0xff]
  %v18 = vld [vmem:[%s0 + $0x20] sm:$0xff]
  %v19 = vld [vmem:[%s0 + $0x28] sm:$0xff]
  %v20 = vld [vmem:[%s0 + $0x30] sm:$0xff]
  %v21 = vld [vmem:[%s1] sm:$0xff]
  %v22 = vld [vmem:[%s1 + $0x8] sm:$0xff]
  %v23 = vld [vmem:[%s2] sm:$0x1]
  %v25 = vperm.slane %v23, 0
  %vm27 = vcmask 130048
  %v29 = vsel %vm27, %v14, 0
  %v32 = vsel %vm27, %v15, 0
  %v35 = vsel %vm27, %v16, 0
  %v38 = vsel %vm27, %v17, 0
  %v41 = vsel %vm27, %v18, 0
  %v44 = vsel %vm27, %v19, 0
  %v47 = vsel %vm27, %v20, 0
  %49 = vmatpush.msra.mxu0 0.0
  %50 = vmatpush.msra.mxu0 0.0
  %51 = vmatpush.msra.mxu0 0.0
  %52 = vmatpush.msra.mxu0 0.0
  %53 = vmatpush.msra.mxu0 0.0
  %54 = vmatpush.msra.mxu0 0.0
  %55 = vmatpush.msra.mxu0 0.0
  %56 = vmatpush.msra.mxu0 0.0
  %57 = vmatpush.msra.mxu0 0.0
  %58 = vmatpush.msra.mxu0 0.0
  %59 = vmatpush.msra.mxu0 0.0
  %60 = vmatpush.msra.mxu0 0.0
  %61 = vmatpush.msra.mxu0 0.0
  %62 = vmatpush.msra.mxu0 0.0
  %63 = vmatpush.msra.mxu0 %v22
  %64 = vmatpush.msra.mxu0 %v21
  %65 = vmatmul.f32.gmra.mxu0 %v29
  %v66 = vpop.f32.mrf.mxu0
  %v67 = vadd.f32 %v25, %v66
  %68 = vmatmul.f32.gmra.mxu0 %v32
  %v69 = vpop.f32.mrf.mxu0
  %v70 = vadd.f32 %v25, %v69
  %71 = vmatmul.f32.gmra.mxu0 %v35
  %v72 = vpop.f32.mrf.mxu0
  %v73 = vadd.f32 %v25, %v72
  %74 = vmatmul.f32.gmra.mxu0 %v38
  %v75 = vpop.f32.mrf.mxu0
  %v76 = vadd.f32 %v25, %v75
  %77 = vmatmul.f32.gmra.mxu0 %v41
  %v78 = vpop.f32.mrf.mxu0
  %v79 = vadd.f32 %v25, %v78
  %80 = vmatmul.f32.gmra.mxu0 %v44
  %v81 = vpop.f32.mrf.mxu0
  %v82 = vadd.f32 %v25, %v81
  %83 = vmatmul.f32.gmra.mxu0 %v47
  %v84 = vpop.f32.mrf.mxu0
  %v85 = vadd.f32 %v25, %v84
  %86 = vdwg.mxu0
  %v87 = vmul.f32 %v67, 0.5
  %v88 = vmul.f32 %v70, 0.5
  %v89 = vmul.f32 %v73, 0.5
  %v90 = vmul.f32 %v76, 0.5
  %v91 = vmul.f32 %v79, 0.5
  %v92 = vmul.f32 %v82, 0.5
  %v93 = vmul.f32 %v85, 0.5
  %v94 = vmul.f32 %v67, %v67
  %v95 = vmul.f32 %v70, %v70
  %v96 = vmul.f32 %v73, %v73
  %v97 = vmul.f32 %v76, %v76
  %v98 = vmul.f32 %v79, %v79
  %v99 = vmul.f32 %v82, %v82
  %v100 = vmul.f32 %v85, %v85
  %v101 = vmul.f32 %v94, 0.044715
  %v102 = vmul.f32 %v95, 0.044715
  %v103 = vmul.f32 %v96, 0.044715
  %v104 = vmul.f32 %v97, 0.044715
  %v105 = vmul.f32 %v98, 0.044715
  %v106 = vmul.f32 %v99, 0.044715
  %v107 = vmul.f32 %v100, 0.044715
  %v108 = vadd.f32 %v101, 1.0
  %v109 = vadd.f32 %v102, 1.0
  %v110 = vadd.f32 %v103, 1.0
  %v111 = vadd.f32 %v104, 1.0
  %v112 = vadd.f32 %v105, 1.0
  %v113 = vadd.f32 %v106, 1.0
  %v114 = vadd.f32 %v107, 1.0
  %v115 = vmul.f32 %v67, %v108
  %v116 = vmul.f32 %v70, %v109
  %v117 = vmul.f32 %v73, %v110
  %v118 = vmul.f32 %v76, %v111
  %v119 = vmul.f32 %v79, %v112
  %v120 = vmul.f32 %v82, %v113
  %v121 = vmul.f32 %v85, %v114
  %v122 = vtanh.pop %v115
  %v123 = vtanh.pop %v116
  %v124 = vtanh.pop %v117
  %v125 = vtanh.pop %v118
  %v126 = vtanh.pop %v119
  %v127 = vtanh.pop %v120
  %v128 = vtanh.pop %v121
  %v129 = vadd.f32 %v122, 1.0
  %v130 = vadd.f32 %v123, 1.0
  %v131 = vadd.f32 %v124, 1.0
  %v132 = vadd.f32 %v125, 1.0
  %v133 = vadd.f32 %v126, 1.0
  %v134 = vadd.f32 %v127, 1.0
  %v135 = vadd.f32 %v128, 1.0
  %v136 = vmul.f32 %v87, %v129
  %v137 = vmul.f32 %v88, %v130
  %v138 = vmul.f32 %v89, %v131
  %v139 = vmul.f32 %v90, %v132
  %v140 = vmul.f32 %v91, %v133
  %v141 = vmul.f32 %v92, %v134
  %v142 = vmul.f32 %v93, %v135
  %143 = vst.msk [vmem:[%s3] sm:$0xff] %vm27, %v136
  %144 = vst.msk [vmem:[%s3 + $0x8] sm:$0xff] %vm27, %v137
  %145 = vst.msk [vmem:[%s3 + $0x10] sm:$0xff] %vm27, %v138
  %146 = vst.msk [vmem:[%s3 + $0x18] sm:$0xff] %vm27, %v139
  %147 = vst.msk [vmem:[%s3 + $0x20] sm:$0xff] %vm27, %v140
  %148 = vst.msk [vmem:[%s3 + $0x28] sm:$0xff] %vm27, %v141
  %149 = vst.msk [vmem:[%s3 + $0x30] sm:$0xff] %vm27, %v142
  // Predicated region
  $region14: #{model_forward.1} parent=0 // pred_check
    _
  $region15: #{model_forward.1} parent=0 // pred_check_branch
    %151 = sbr.rel (0) target = $region17
  $region16: #{model_forward.1} parent=0 // pred_region
    _
  $region17: #{model_forward.1} parent=0 // pred_fallthru
    _
  // Predicated region
  $region18: #{model_forward.1} parent=0 // pred_check
    _
  $region19: #{model_forward.1} parent=0 // pred_check_branch
    %153 = sbr.rel (0) target = $region21
  $region20: #{model_forward.1} parent=0 // pred_region
    _
  $region21: #{model_forward.1} parent=0 // pred_fallthru
    _

</llo_original>
